<compile_context>
chip_gen: v6e
topology: v6e:2x2x1
jax: 0.10.0
libtpu: 0.0.40
codegen_flags: <defaults>
</compile_context>

<pallas_src>
import functools

import jax
import jax.numpy as jnp
from jax.experimental import pallas as pl
from jax.experimental.pallas import tpu as pltpu


def _smearing_kernel(dist_ref, offset_ref, out_ref, *, coeff):
    # dist_ref:   (TN, 1) f32  current sublane-tile of flattened distances
    # offset_ref: (1, K)  f32  full offset row (same every grid step)
    # out_ref:    (TN, K) f32  output tile in the module's native (N, K) layout
    d = dist_ref[...]                        # (TN, 1)
    off = offset_ref[...]                    # (1, K)
    x = coeff * (d - off)                    # broadcast -> (TN, K), VPU elementwise
    # sigmoid(x) == 0.5 * tanh(0.5 * x) + 0.5  (single EUP op instead of exp+recip)
    out_ref[...] = 0.5 * jnp.tanh(0.5 * x) + 0.5 + 0.001 * x


def linear_sigmoid_smearing(dist, offset, coeff, *, tile_n=2048):
    """LinearSigmoidSmearing.forward: returns (N, K) with N = dist.size, K = num_sigmoid."""
    k = offset.shape[0]
    dist_col = dist.reshape(-1, 1).astype(jnp.float32)       # (N, 1)
    n = dist_col.shape[0]
    offset_row = offset.reshape(1, k).astype(jnp.float32)    # (1, K)

    # Tile the sublane (N) axis: TN must be a multiple of 8; clamp so tiny
    # inputs don't burn compute / VMEM on padding.
    tn = min(int(tile_n), ((n + 7) // 8) * 8)
    tn = ((tn + 7) // 8) * 8
    grid = (pl.cdiv(n, tn),)

    return pl.pallas_call(
        functools.partial(_smearing_kernel, coeff=float(coeff)),
        out_shape=jax.ShapeDtypeStruct((n, k), jnp.float32),
        grid_spec=pltpu.PrefetchScalarGridSpec(
            num_scalar_prefetch=0,
            grid=grid,
            in_specs=[
                pl.BlockSpec((tn, 1), lambda i: (i, 0)),   # dist column tile
                pl.BlockSpec((1, k), lambda i: (0, 0)),    # full offsets, every step
            ],
            # K equals the full array dim -> legal non-128 block last-dim, and
            # each (TN, K) block is a fully-contiguous HBM slab.
            out_specs=pl.BlockSpec((tn, k), lambda i: (i, 0)),
        ),
        compiler_params=pltpu.CompilerParams(
            # N-tiles are independent -> megacore-shard across the 2 TCs on v7x.
            dimension_semantics=("parallel",),
            # Headroom for larger tile_n sweeps (v5e scoped default is 16 MiB).
            vmem_limit_bytes=32 * 1024 * 1024,
        ),
    )(dist_col, offset_row)


def make_params(start=-5.0, stop=5.0, num_sigmoid=50, basis_width_scalar=1.0):
    """Deterministic parameter setup mirroring the module's __init__.

    coeff is computed in Python (no device sync, unlike float(offset[1]-offset[0])).
    """
    offset = jnp.linspace(start, stop, num_sigmoid, dtype=jnp.float32)
    step = (stop - start) / (num_sigmoid - 1)
    coeff = float(basis_width_scalar) / step
    return offset, coeff


def _reference(dist, offset, coeff):
    exp_dist = coeff * (dist.reshape(-1, 1).astype(jnp.float32) - offset.reshape(1, -1))
    return jax.nn.sigmoid(exp_dist) + 0.001 * exp_dist


if __name__ == "__main__":
    key = jax.random.PRNGKey(0)
    offset, coeff = make_params(start=-5.0, stop=5.0, num_sigmoid=50,
                                basis_width_scalar=1.0)

    # Small example: (2, 64) distances in [0, 6)  (any shape works; forward flattens).
    dist = jax.random.uniform(key, (2, 64), dtype=jnp.float32) * 6.0
    out = jax.block_until_ready(linear_sigmoid_smearing(dist, offset, coeff))
    ref = _reference(dist, offset, coeff)
    assert out.shape == (dist.size, offset.shape[0])
    assert jnp.allclose(out, ref, atol=1e-5, rtol=1e-5), \
        float(jnp.max(jnp.abs(out - ref)))

    # Multi-step grid with a partial last block (N = 1616 not divisible by tile 512).
    key2 = jax.random.PRNGKey(1)
    dist2 = jax.random.uniform(key2, (1616,), dtype=jnp.float32) * 6.0
    out2 = jax.block_until_ready(
        linear_sigmoid_smearing(dist2, offset, coeff, tile_n=512))
    ref2 = _reference(dist2, offset, coeff)
    assert out2.shape == (dist2.size, offset.shape[0])
    assert jnp.allclose(out2, ref2, atol=1e-5, rtol=1e-5), \
        float(jnp.max(jnp.abs(out2 - ref2)))

    print("KERNEL_OK")
</pallas_src>

<mosaic_0001>
module attributes {stable_mosaic.version = 11 : i64} {
  func.func @_smearing_kernel(%arg0: i32, %arg1: memref<128x1xf32, #tpu.memory_space<vmem>>, %arg2: memref<1x50xf32, #tpu.memory_space<vmem>>, %arg3: memref<128x50xf32, #tpu.memory_space<vmem>>) attributes {dimension_semantics = [#tpu.dimension_semantics<parallel>], iteration_bounds = array<i64: 1>, scalar_prefetch = 0 : i64, scratch_operands = 0 : i64, tpu.core_type = #tpu.core_type<tc>, window_params = [{transform_indices = @transform_0, window_bounds = array<i64: 128, 1>}, {pipeline_mode = #tpu.pipeline_mode<synchronous>, transform_indices = @transform_1, window_bounds = array<i64: 1, 50>}, {transform_indices = @transform_2, window_bounds = array<i64: 128, 50>}]} {
    %c0 = arith.constant 0 : index
    %c0_0 = arith.constant 0 : index
    %0 = vector.load %arg1[%c0, %c0_0] : memref<128x1xf32, #tpu.memory_space<vmem>>, vector<128x1xf32>
    %c0_1 = arith.constant 0 : index
    %c0_2 = arith.constant 0 : index
    %1 = vector.load %arg2[%c0_1, %c0_2] : memref<1x50xf32, #tpu.memory_space<vmem>>, vector<1x50xf32>
    %2 = vector.broadcast %0 : vector<128x1xf32> to vector<128x50xf32>
    %3 = vector.broadcast %1 : vector<1x50xf32> to vector<128x50xf32>
    %4 = arith.subf %2, %3 : vector<128x50xf32>
    %cst = arith.constant 4.900000e+00 : f32
    %5 = vector.broadcast %cst : f32 to vector<128x50xf32>
    %6 = arith.mulf %5, %4 : vector<128x50xf32>
    %cst_3 = arith.constant 5.000000e-01 : f32
    %7 = vector.broadcast %cst_3 : f32 to vector<128x50xf32>
    %8 = arith.mulf %7, %6 : vector<128x50xf32>
    %9 = math.tanh %8 : vector<128x50xf32>
    %cst_4 = arith.constant 5.000000e-01 : f32
    %10 = vector.broadcast %cst_4 : f32 to vector<128x50xf32>
    %11 = arith.mulf %10, %9 : vector<128x50xf32>
    %cst_5 = arith.constant 5.000000e-01 : f32
    %12 = vector.broadcast %cst_5 : f32 to vector<128x50xf32>
    %13 = arith.addf %11, %12 : vector<128x50xf32>
    %cst_6 = arith.constant 1.000000e-03 : f32
    %14 = vector.broadcast %cst_6 : f32 to vector<128x50xf32>
    %15 = arith.mulf %14, %6 : vector<128x50xf32>
    %16 = arith.addf %13, %15 : vector<128x50xf32>
    %c0_7 = arith.constant 0 : index
    %c0_8 = arith.constant 0 : index
    %17 = vector.load %arg3[%c0_7, %c0_8] : memref<128x50xf32, #tpu.memory_space<vmem>>, vector<128x50xf32>
    tpu.vector_store %arg3[%c0_7, %c0_8], %16 {strides = array<i32>} : memref<128x50xf32, #tpu.memory_space<vmem>>, vector<128x50xf32>,
    return
  }
  func.func @transform_0(%arg0: i32) -> (i32, i32) {
    %c0_i32 = arith.constant 0 : i32
    %c0_i32_0 = arith.constant 0 : i32
    return %arg0, %c0_i32 : i32, i32
  }
  func.func @transform_1(%arg0: i32) -> (i32, i32) {
    %c0_i32 = arith.constant 0 : i32
    %c0_i32_0 = arith.constant 0 : i32
    %c0_i32_1 = arith.constant 0 : i32
    return %c0_i32, %c0_i32_0 : i32, i32
  }
  func.func @transform_2(%arg0: i32) -> (i32, i32) {
    %c0_i32 = arith.constant 0 : i32
    %c0_i32_0 = arith.constant 0 : i32
    return %arg0, %c0_i32 : i32, i32
  }
}

</mosaic_0001>

<llo_original>
// kernel: tpu_custom_call.1
$region0: #{tpu_custom_call.1}
  #allocation0 [shape = 'u32[]', space=smem, size = 0x4, offset = 0x4, fixed_abs, tag = 'smem constant byte address 0x4 - core index']
  #allocation1 [shape = 'u32[144,128]{1,0:T(1,128)}', space=vmem, size = 0x12000, scoped, tag = 'internal scratch']
  %s0 = inlined_call_operand.vmem [shape: f32[128,1], index: 0, kind: input, shape index: {}]
  %s1 = inlined_call_operand.vmem [shape: f32[1,50], index: 1, kind: input, shape index: {}]
  %s2 = inlined_call_operand.vmem [shape: f32[128,50], index: 2, kind: output, shape index: {}]
  %s3 = sld [smem:[#allocation0]]
  $region18: #{tpu_custom_call.1} parent=0
    _
  %s5 = ssub.s32 1, %s3
  %s6 = scalar_select 0, %s5, %s3
  // Predicated region
  $region2: #{tpu_custom_call.1} parent=0 // pred_check
    _
  $region3: #{tpu_custom_call.1} parent=0 // pred_check_branch
    %8 = sbr.rel (0) target = $region5
  $region4: #{tpu_custom_call.1} parent=0 // pred_region
    _
  $region5: #{tpu_custom_call.1} parent=0 // pred_fallthru
    _
  // Predicated region
  $region6: #{tpu_custom_call.1} parent=0 // pred_check
    _
  $region7: #{tpu_custom_call.1} parent=0 // pred_check_branch
    %10 = sbr.rel (0) target = $region9
  $region8: #{tpu_custom_call.1} parent=0 // pred_region
    _
  $region9: #{tpu_custom_call.1} parent=0 // pred_fallthru
    _
  %v11 = vld [vmem:[%s0] sm:$0xff]
  %v12 = vld [vmem:[%s0 + $0x8] sm:$0xff]
  %v13 = vld [vmem:[%s0 + $0x10] sm:$0xff]
  %v14 = vld [vmem:[%s0 + $0x18] sm:$0xff]
  %v15 = vld [vmem:[%s0 + $0x20] sm:$0xff]
  %v16 = vld [vmem:[%s0 + $0x28] sm:$0xff]
  %v17 = vld [vmem:[%s0 + $0x30] sm:$0xff]
  %v18 = vld [vmem:[%s0 + $0x38] sm:$0xff]
  %v19 = vld [vmem:[%s0 + $0x40] sm:$0xff]
  %v20 = vld [vmem:[%s0 + $0x48] sm:$0xff]
  %v21 = vld [vmem:[%s0 + $0x50] sm:$0xff]
  %v22 = vld [vmem:[%s0 + $0x58] sm:$0xff]
  %v23 = vld [vmem:[%s0 + $0x60] sm:$0xff]
  %v24 = vld [vmem:[%s0 + $0x68] sm:$0xff]
  %v25 = vld [vmem:[%s0 + $0x70] sm:$0xff]
  %v26 = vld [vmem:[%s0 + $0x78] sm:$0xff]
  %v27 = vld [vmem:[%s1] sm:$0x1]
  %29 = vset.pattern.permute.xlu0 0
  %30 = vperm.xlu0 %29, %v11
  %v31 = vpop.permute.xlu0 %30
  %34 = vset.pattern.permute.xlu0 0
  %35 = vperm.xlu0 %34, %v12
  %v36 = vpop.permute.xlu0 %35
  %39 = vset.pattern.permute.xlu0 0
  %40 = vperm.xlu0 %39, %v13
  %v41 = vpop.permute.xlu0 %40
  %44 = vset.pattern.permute.xlu0 0
  %45 = vperm.xlu0 %44, %v14
  %v46 = vpop.permute.xlu0 %45
  %49 = vset.pattern.permute.xlu0 0
  %50 = vperm.xlu0 %49, %v15
  %v51 = vpop.permute.xlu0 %50
  %54 = vset.pattern.permute.xlu0 0
  %55 = vperm.xlu0 %54, %v16
  %v56 = vpop.permute.xlu0 %55
  %59 = vset.pattern.permute.xlu0 0
  %60 = vperm.xlu0 %59, %v17
  %v61 = vpop.permute.xlu0 %60
  %64 = vset.pattern.permute.xlu0 0
  %65 = vperm.xlu0 %64, %v18
  %v66 = vpop.permute.xlu0 %65
  %69 = vset.pattern.permute.xlu0 0
  %70 = vperm.xlu0 %69, %v19
  %v71 = vpop.permute.xlu0 %70
  %74 = vset.pattern.permute.xlu0 0
  %75 = vperm.xlu0 %74, %v20
  %v76 = vpop.permute.xlu0 %75
  %79 = vset.pattern.permute.xlu0 0
  %80 = vperm.xlu0 %79, %v21
  %v81 = vpop.permute.xlu0 %80
  %84 = vset.pattern.permute.xlu0 0
  %85 = vperm.xlu0 %84, %v22
  %v86 = vpop.permute.xlu0 %85
  %89 = vset.pattern.permute.xlu0 0
  %90 = vperm.xlu0 %89, %v23
  %v91 = vpop.permute.xlu0 %90
  %94 = vset.pattern.permute.xlu0 0
  %95 = vperm.xlu0 %94, %v24
  %v96 = vpop.permute.xlu0 %95
  %99 = vset.pattern.permute.xlu0 0
  %100 = vperm.xlu0 %99, %v25
  %v101 = vpop.permute.xlu0 %100
  %104 = vset.pattern.permute.xlu0 0
  %105 = vperm.xlu0 %104, %v26
  %v106 = vpop.permute.xlu0 %105
  %v109 = vlaneseq
  %v110 = vshrl.u32 %v109, 7
  %v111 = vsub.s32 0, %v110
  %v112 = vrot.slane %v27, %v111
  %v114 = vsub.f32 %v31, %v112
  %v115 = vsub.f32 %v36, %v112
  %v116 = vsub.f32 %v41, %v112
  %v117 = vsub.f32 %v46, %v112
  %v118 = vsub.f32 %v51, %v112
  %v119 = vsub.f32 %v56, %v112
  %v120 = vsub.f32 %v61, %v112
  %v121 = vsub.f32 %v66, %v112
  %v122 = vsub.f32 %v71, %v112
  %v123 = vsub.f32 %v76, %v112
  %v124 = vsub.f32 %v81, %v112
  %v125 = vsub.f32 %v86, %v112
  %v126 = vsub.f32 %v91, %v112
  %v127 = vsub.f32 %v96, %v112
  %v128 = vsub.f32 %v101, %v112
  %v129 = vsub.f32 %v106, %v112
  %v130 = vmul.f32 %v114, 4.9
  %v131 = vmul.f32 %v115, 4.9
  %v132 = vmul.f32 %v116, 4.9
  %v133 = vmul.f32 %v117, 4.9
  %v134 = vmul.f32 %v118, 4.9
  %v135 = vmul.f32 %v119, 4.9
  %v136 = vmul.f32 %v120, 4.9
  %v137 = vmul.f32 %v121, 4.9
  %v138 = vmul.f32 %v122, 4.9
  %v139 = vmul.f32 %v123, 4.9
  %v140 = vmul.f32 %v124, 4.9
  %v141 = vmul.f32 %v125, 4.9
  %v142 = vmul.f32 %v126, 4.9
  %v143 = vmul.f32 %v127, 4.9
  %v144 = vmul.f32 %v128, 4.9
  %v145 = vmul.f32 %v129, 4.9
  %v146 = vmul.f32 %v130, 0.5
  %v147 = vmul.f32 %v131, 0.5
  %v148 = vmul.f32 %v132, 0.5
  %v149 = vmul.f32 %v133, 0.5
  %v150 = vmul.f32 %v134, 0.5
  %v151 = vmul.f32 %v135, 0.5
  %v152 = vmul.f32 %v136, 0.5
  %v153 = vmul.f32 %v137, 0.5
  %v154 = vmul.f32 %v138, 0.5
  %v155 = vmul.f32 %v139, 0.5
  %v156 = vmul.f32 %v140, 0.5
  %v157 = vmul.f32 %v141, 0.5
  %v158 = vmul.f32 %v142, 0.5
  %v159 = vmul.f32 %v143, 0.5
  %v160 = vmul.f32 %v144, 0.5
  %v161 = vmul.f32 %v145, 0.5
  %v162 = vtanh.pop %v146
  %v163 = vtanh.pop %v147
  %v164 = vtanh.pop %v148
  %v165 = vtanh.pop %v149
  %v166 = vtanh.pop %v150
  %v167 = vtanh.pop %v151
  %v168 = vtanh.pop %v152
  %v169 = vtanh.pop %v153
  %v170 = vtanh.pop %v154
  %v171 = vtanh.pop %v155
  %v172 = vtanh.pop %v156
  %v173 = vtanh.pop %v157
  %v174 = vtanh.pop %v158
  %v175 = vtanh.pop %v159
  %v176 = vtanh.pop %v160
  %v177 = vtanh.pop %v161
  %v178 = vmul.f32 %v162, 0.5
  %v179 = vmul.f32 %v163, 0.5
  %v180 = vmul.f32 %v164, 0.5
  %v181 = vmul.f32 %v165, 0.5
  %v182 = vmul.f32 %v166, 0.5
  %v183 = vmul.f32 %v167, 0.5
  %v184 = vmul.f32 %v168, 0.5
  %v185 = vmul.f32 %v169, 0.5
  %v186 = vmul.f32 %v170, 0.5
  %v187 = vmul.f32 %v171, 0.5
  %v188 = vmul.f32 %v172, 0.5
  %v189 = vmul.f32 %v173, 0.5
  %v190 = vmul.f32 %v174, 0.5
  %v191 = vmul.f32 %v175, 0.5
  %v192 = vmul.f32 %v176, 0.5
  %v193 = vmul.f32 %v177, 0.5
  %v194 = vadd.f32 %v178, 0.5
  %v195 = vadd.f32 %v179, 0.5
  %v196 = vadd.f32 %v180, 0.5
  %v197 = vadd.f32 %v181, 0.5
  %v198 = vadd.f32 %v182, 0.5
  %v199 = vadd.f32 %v183, 0.5
  %v200 = vadd.f32 %v184, 0.5
  %v201 = vadd.f32 %v185, 0.5
  %v202 = vadd.f32 %v186, 0.5
  %v203 = vadd.f32 %v187, 0.5
  %v204 = vadd.f32 %v188, 0.5
  %v205 = vadd.f32 %v189, 0.5
  %v206 = vadd.f32 %v190, 0.5
  %v207 = vadd.f32 %v191, 0.5
  %v208 = vadd.f32 %v192, 0.5
  %v209 = vadd.f32 %v193, 0.5
  %v210 = vmul.f32 %v130, 0.001
  %v211 = vmul.f32 %v131, 0.001
  %v212 = vmul.f32 %v132, 0.001
  %v213 = vmul.f32 %v133, 0.001
  %v214 = vmul.f32 %v134, 0.001
  %v215 = vmul.f32 %v135, 0.001
  %v216 = vmul.f32 %v136, 0.001
  %v217 = vmul.f32 %v137, 0.001
  %v218 = vmul.f32 %v138, 0.001
  %v219 = vmul.f32 %v139, 0.001
  %v220 = vmul.f32 %v140, 0.001
  %v221 = vmul.f32 %v141, 0.001
  %v222 = vmul.f32 %v142, 0.001
  %v223 = vmul.f32 %v143, 0.001
  %v224 = vmul.f32 %v144, 0.001
  %v225 = vmul.f32 %v145, 0.001
  %v226 = vadd.f32 %v194, %v210
  %v227 = vadd.f32 %v195, %v211
  %v228 = vadd.f32 %v196, %v212
  %v229 = vadd.f32 %v197, %v213
  %v230 = vadd.f32 %v198, %v214
  %v231 = vadd.f32 %v199, %v215
  %v232 = vadd.f32 %v200, %v216
  %v233 = vadd.f32 %v201, %v217
  %v234 = vadd.f32 %v202, %v218
  %v235 = vadd.f32 %v203, %v219
  %v236 = vadd.f32 %v204, %v220
  %v237 = vadd.f32 %v205, %v221
  %v238 = vadd.f32 %v206, %v222
  %v239 = vadd.f32 %v207, %v223
  %v240 = vadd.f32 %v208, %v224
  %v241 = vadd.f32 %v209, %v225
  %vm242 = vcmask 408576
  %243 = vst.msk [vmem:[%s2] sm:$0xff] %vm242, %v226
  %244 = vst.msk [vmem:[%s2 + $0x8] sm:$0xff] %vm242, %v227
  %245 = vst.msk [vmem:[%s2 + $0x10] sm:$0xff] %vm242, %v228
  %246 = vst.msk [vmem:[%s2 + $0x18] sm:$0xff] %vm242, %v229
  %247 = vst.msk [vmem:[%s2 + $0x20] sm:$0xff] %vm242, %v230
  %248 = vst.msk [vmem:[%s2 + $0x28] sm:$0xff] %vm242, %v231
  %249 = vst.msk [vmem:[%s2 + $0x30] sm:$0xff] %vm242, %v232
  %250 = vst.msk [vmem:[%s2 + $0x38] sm:$0xff] %vm242, %v233
  %251 = vst.msk [vmem:[%s2 + $0x40] sm:$0xff] %vm242, %v234
  %252 = vst.msk [vmem:[%s2 + $0x48] sm:$0xff] %vm242, %v235
  %253 = vst.msk [vmem:[%s2 + $0x50] sm:$0xff] %vm242, %v236
  %254 = vst.msk [vmem:[%s2 + $0x58] sm:$0xff] %vm242, %v237
  %255 = vst.msk [vmem:[%s2 + $0x60] sm:$0xff] %vm242, %v238
  %256 = vst.msk [vmem:[%s2 + $0x68] sm:$0xff] %vm242, %v239
  %257 = vst.msk [vmem:[%s2 + $0x70] sm:$0xff] %vm242, %v240
  %258 = vst.msk [vmem:[%s2 + $0x78] sm:$0xff] %vm242, %v241
  // Predicated region
  $region10: #{tpu_custom_call.1} parent=0 // pred_check
    _
  $region11: #{tpu_custom_call.1} parent=0 // pred_check_branch
    %260 = sbr.rel (0) target = $region13
  $region12: #{tpu_custom_call.1} parent=0 // pred_region
    _
  $region13: #{tpu_custom_call.1} parent=0 // pred_fallthru
    _
  // Predicated region
  $region14: #{tpu_custom_call.1} parent=0 // pred_check
    _
  $region15: #{tpu_custom_call.1} parent=0 // pred_check_branch
    %262 = sbr.rel (0) target = $region17
  $region16: #{tpu_custom_call.1} parent=0 // pred_region
    _
  $region17: #{tpu_custom_call.1} parent=0 // pred_fallthru
    _

</llo_original>
